<compile_context>
chip_gen: v7x
topology: tpu7x:2x2x1
jax: 0.10.0
libtpu: 0.0.40
codegen_flags: <defaults>
</compile_context>

<pallas_src>
import functools

import jax
import jax.numpy as jnp
from jax.experimental import pallas as pl
from jax.experimental.pallas import tpu as pltpu


def _softplus(x):
    # numerically-stable softplus, matches F.softplus semantics (f32 math)
    return jnp.maximum(x, 0.0) + jnp.log1p(jnp.exp(-jnp.abs(x)))


def _round_up(a, b):
    return -(-a // b) * b


def decoder_kernel(x_ref, bid_ref, zb1_ref,
                   w1x_ref, w2_ref, b2_ref, w3_ref, b3_ref,
                   wh_ref, bh_ref,
                   mu_ref, sigma_ref, *, y_pad):
    """One tile of tm points (flattened over batch)."""
    cdt = w1x_ref.dtype            # matmul operand dtype (f32 or bf16)
    f32 = jnp.float32

    # ---- layer 1, point-major: (tm, x_dim) @ (x_dim, h) -> (tm, h) ---------
    h_pm = jnp.dot(x_ref[...], w1x_ref[...], preferred_element_type=f32)
    h = h_pm.T                                           # (h, tm) via XLU

    # ---- per-point z/bias contribution: one-hot column-select on the MXU ---
    ids = bid_ref[...]                                   # (1, tm) int32
    n_b = zb1_ref.shape[1]                               # padded batch count
    b_iota = jax.lax.broadcasted_iota(jnp.int32, (n_b, ids.shape[1]), 0)
    one_hot = jnp.where(b_iota == ids, 1.0, 0.0).astype(cdt)       # (B_pad, tm)
    zterm = jnp.dot(zb1_ref[...], one_hot, preferred_element_type=f32)  # (h, tm)
    h = jnp.maximum(h + zterm, 0.0)                      # ReLU, f32

    # ---- layers 2 & 3, feature-major (lane-dense) ---------------------------
    h = jnp.maximum(
        jnp.dot(w2_ref[...], h.astype(cdt), preferred_element_type=f32)
        + b2_ref[...], 0.0)
    h = jnp.maximum(
        jnp.dot(w3_ref[...], h.astype(cdt), preferred_element_type=f32)
        + b3_ref[...], 0.0)

    # ---- fused heads: rows [0, y_pad) = mu, rows [y_pad, 2*y_pad) = pre-sigma
    head = (jnp.dot(wh_ref[...], h.astype(cdt), preferred_element_type=f32)
            + bh_ref[...])
    mu_ref[...] = head[:y_pad].astype(mu_ref.dtype)
    sigma_ref[...] = (0.1 + 0.9 * _softplus(head[y_pad:])).astype(sigma_ref.dtype)


def decoder_forward(x, z, params, *, tm=1024, compute_dtype=jnp.float32):
    """x: (B, N, x_dim); z: (B, z_dim) -> (mu, sigma) each (B, N, y_dim).

    tm: point-tile size (128-aligned; 1024-2048 is a good range).  Keep the
    live feature-major intermediates (~4 * h_dim * tm * 4 B) to a few MiB.
    compute_dtype: dtype of the MXU operands (jnp.bfloat16 recommended on
    v6e/v7x); accumulation and the elementwise epilogue stay in f32.
    """
    B, N, x_dim = x.shape
    z_dim = z.shape[-1]
    h_dim = params["w1"].shape[-1]
    y_dim = params["wmu"].shape[-1]
    f32 = jnp.float32
    cdt = compute_dtype

    y_pad = max(8, _round_up(y_dim, 8))          # pad heads to full sublane tiles
    b_pad = max(8, _round_up(B, 8))              # padded batch count for one-hot

    # ---- weight prep: split layer-1, fuse+pad heads, transpose for fm layers
    w1 = params["w1"].astype(f32)                         # (x_dim + z_dim, h)
    w1x = w1[:x_dim]                                      # (x_dim, h) point-major
    w1z = w1[x_dim:]                                      # (z_dim, h)
    # per-batch first-layer contribution of z plus bias (tiny): (h, B_pad)
    zb1 = z.astype(f32) @ w1z + params["b1"].astype(f32)  # (B, h)
    zb1_fm = jnp.zeros((h_dim, b_pad), f32).at[:, :B].set(zb1.T)

    w2_t = params["w2"].astype(f32).T                     # (h, h)
    b2_t = params["b2"].astype(f32).reshape(h_dim, 1)
    w3_t = params["w3"].astype(f32).T
    b3_t = params["b3"].astype(f32).reshape(h_dim, 1)

    wh = jnp.zeros((2 * y_pad, h_dim), f32)
    wh = wh.at[:y_dim].set(params["wmu"].astype(f32).T)
    wh = wh.at[y_pad:y_pad + y_dim].set(params["ws"].astype(f32).T)
    bh = jnp.zeros((2 * y_pad, 1), f32)
    bh = bh.at[:y_dim, 0].set(params["bmu"].astype(f32).reshape(-1))
    bh = bh.at[y_pad:y_pad + y_dim, 0].set(params["bs"].astype(f32).reshape(-1))

    # matmul operands in compute dtype; biases stay f32 for the epilogue
    w1x_c = w1x.astype(cdt)
    zb1_c = zb1_fm.astype(cdt)
    w2_c = w2_t.astype(cdt)
    w3_c = w3_t.astype(cdt)
    wh_c = wh.astype(cdt)

    # ---- flatten + tile the point axis -------------------------------------
    P = B * N
    p8 = _round_up(P, 8)
    tm_req = _round_up(tm, 128)
    if p8 <= 128:
        tm_eff = p8                            # single tiny tile (full-dim block)
    else:
        # 128-aligned tiles; prefer >= 2 tiles so both v7x TensorCores are busy
        tm_eff = max(128, min(tm_req, _round_up(-(-p8 // 2), 128)))
    n_pad = _round_up(p8, tm_eff)
    grid = (n_pad // tm_eff,)

    x_flat = x.reshape(P, x_dim).astype(cdt)               # contiguous, no transpose
    if n_pad != P:
        x_flat = jnp.pad(x_flat, ((0, n_pad - P), (0, 0)))
    batch_id = (jnp.arange(n_pad, dtype=jnp.int32) // N).reshape(1, n_pad)

    # ---- advisory cost estimate ---------------------------------------------
    flops = 2 * n_pad * (x_dim * h_dim + b_pad * h_dim
                         + 2 * h_dim * h_dim + 2 * y_pad * h_dim)
    transcendentals = n_pad * y_pad * 2
    in_bytes = jnp.dtype(cdt).itemsize
    weight_bytes = in_bytes * (x_dim * h_dim + h_dim * b_pad + 2 * h_dim * h_dim
                               + 2 * y_pad * h_dim) + 4 * (2 * h_dim + 2 * y_pad)
    bytes_accessed = (in_bytes * n_pad * x_dim + 4 * n_pad
                      + 4 * 2 * y_pad * n_pad + weight_bytes)

    # constant weights: DMA'd once (constant index_map).  For very large h_dim
    # add pipeline_mode=pl.Buffered(1) here so v7x's 64 MiB VMEM is not blown
    # by double-buffered weight copies.
    const = lambda shp: pl.BlockSpec(shp, lambda i: (0, 0))

    mu_t, sigma_t = pl.pallas_call(
        functools.partial(decoder_kernel, y_pad=y_pad),
        out_shape=(jax.ShapeDtypeStruct((y_pad, n_pad), f32),
                   jax.ShapeDtypeStruct((y_pad, n_pad), f32)),
        grid_spec=pltpu.PrefetchScalarGridSpec(
            num_scalar_prefetch=0,
            grid=grid,
            in_specs=[
                pl.BlockSpec((tm_eff, x_dim), lambda i: (i, 0)),   # x, point-major
                pl.BlockSpec((1, tm_eff), lambda i: (0, i)),       # batch ids
                const((h_dim, b_pad)),                             # z@W1z + b1 (fm)
                const((x_dim, h_dim)),                             # W1x
                const((h_dim, h_dim)), const((h_dim, 1)),          # W2^T, b2
                const((h_dim, h_dim)), const((h_dim, 1)),          # W3^T, b3
                const((2 * y_pad, h_dim)), const((2 * y_pad, 1)),  # fused heads
            ],
            out_specs=(
                pl.BlockSpec((y_pad, tm_eff), lambda i: (0, i)),   # mu (fm)
                pl.BlockSpec((y_pad, tm_eff), lambda i: (0, i)),   # sigma (fm)
            ),
        ),
        compiler_params=pltpu.CompilerParams(
            dimension_semantics=("parallel",)),
        cost_estimate=pl.CostEstimate(
            flops=int(flops), transcendentals=int(transcendentals),
            bytes_accessed=int(bytes_accessed)),
    )(x_flat, batch_id, zb1_c, w1x_c, w2_c, b2_t, w3_c, b3_t, wh_c, bh)

    # cheap glue back to the module's (B, N, y_dim) layout
    mu = mu_t[:y_dim, :P].T.reshape(B, N, y_dim)
    sigma = sigma_t[:y_dim, :P].T.reshape(B, N, y_dim)
    return mu, sigma


def init_params(key, x_dim, z_dim, h_dim, y_dim):
    """Deterministic init mimicking nn.Linear (uniform +/- 1/sqrt(fan_in))."""
    def linear(k, fan_in, fan_out):
        kw, kb = jax.random.split(k)
        bound = 1.0 / jnp.sqrt(fan_in)
        w = jax.random.uniform(kw, (fan_in, fan_out), jnp.float32, -bound, bound)
        b = jax.random.uniform(kb, (1, fan_out), jnp.float32, -bound, bound)
        return w, b

    keys = jax.random.split(key, 5)
    w1, b1 = linear(keys[0], x_dim + z_dim, h_dim)
    w2, b2 = linear(keys[1], h_dim, h_dim)
    w3, b3 = linear(keys[2], h_dim, h_dim)
    wmu, bmu = linear(keys[3], h_dim, y_dim)
    ws, bs = linear(keys[4], h_dim, y_dim)
    return dict(w1=w1, b1=b1, w2=w2, b2=b2, w3=w3, b3=b3,
                wmu=wmu, bmu=bmu, ws=ws, bs=bs)


def reference_forward(x, z, p):
    B, N, x_dim = x.shape
    z_rep = jnp.broadcast_to(z[:, None, :], (B, N, z.shape[-1]))
    xz = jnp.concatenate([x, z_rep], axis=-1).reshape(B * N, -1)
    h = jax.nn.relu(xz @ p["w1"] + p["b1"])
    h = jax.nn.relu(h @ p["w2"] + p["b2"])
    h = jax.nn.relu(h @ p["w3"] + p["b3"])
    mu = (h @ p["wmu"] + p["bmu"]).reshape(B, N, -1)
    pre_sigma = (h @ p["ws"] + p["bs"]).reshape(B, N, -1)
    sigma = 0.1 + 0.9 * jax.nn.softplus(pre_sigma)
    return mu, sigma


if __name__ == "__main__":
    x_dim, z_dim, h_dim, y_dim = 3, 8, 32, 2
    key = jax.random.PRNGKey(0)
    kp, kx1, kz1, kx2, kz2 = jax.random.split(key, 5)
    params = init_params(kp, x_dim, z_dim, h_dim, y_dim)

    # --- case 1: tiny shapes, single tile, f32 matmuls ------------------------
    B, N = 2, 8
    x = jax.random.normal(kx1, (B, N, x_dim), jnp.float32)
    z = jax.random.normal(kz1, (B, z_dim), jnp.float32)
    fwd = jax.jit(functools.partial(decoder_forward, params=params))
    mu, sigma = fwd(x, z)
    jax.block_until_ready((mu, sigma))
    mu_ref, sigma_ref = reference_forward(x, z, params)
    assert mu.shape == (B, N, y_dim) and sigma.shape == (B, N, y_dim)
    assert jnp.allclose(mu, mu_ref, atol=1e-5, rtol=1e-5)
    assert jnp.allclose(sigma, sigma_ref, atol=1e-5, rtol=1e-5)
    assert bool(jnp.all(sigma >= 0.1))

    # --- case 2: padding + multi-tile flattened grid, f32 matmuls -------------
    B2, N2 = 3, 300
    x2 = jax.random.normal(kx2, (B2, N2, x_dim), jnp.float32)
    z2 = jax.random.normal(kz2, (B2, z_dim), jnp.float32)
    fwd2 = jax.jit(functools.partial(decoder_forward, params=params))
    mu2, sigma2 = fwd2(x2, z2)
    jax.block_until_ready((mu2, sigma2))
    mu2_ref, sigma2_ref = reference_forward(x2, z2, params)
    assert jnp.allclose(mu2, mu2_ref, atol=1e-5, rtol=1e-5)
    assert jnp.allclose(sigma2, sigma2_ref, atol=1e-5, rtol=1e-5)

    # --- case 3: bf16 matmul operands (fast path on v6e/v7x), relaxed tol -----
    fwd3 = jax.jit(functools.partial(decoder_forward, params=params,
                                     compute_dtype=jnp.bfloat16))
    mu3, sigma3 = fwd3(x2, z2)
    jax.block_until_ready((mu3, sigma3))
    assert jnp.allclose(mu3, mu2_ref, atol=5e-2, rtol=5e-2)
    assert jnp.allclose(sigma3, sigma2_ref, atol=5e-2, rtol=5e-2)

    print("KERNEL_OK")
</pallas_src>

<mosaic_0001>
module attributes {stable_mosaic.version = 11 : i64} {
  func.func @decoder_kernel(%arg0: i32, %arg1: memref<16x3xf32, #tpu.memory_space<vmem>>, %arg2: memref<1x16xi32, #tpu.memory_space<vmem>>, %arg3: memref<32x8xf32, #tpu.memory_space<vmem>>, %arg4: memref<3x32xf32, #tpu.memory_space<vmem>>, %arg5: memref<32x32xf32, #tpu.memory_space<vmem>>, %arg6: memref<32x1xf32, #tpu.memory_space<vmem>>, %arg7: memref<32x32xf32, #tpu.memory_space<vmem>>, %arg8: memref<32x1xf32, #tpu.memory_space<vmem>>, %arg9: memref<16x32xf32, #tpu.memory_space<vmem>>, %arg10: memref<16x1xf32, #tpu.memory_space<vmem>>, %arg11: memref<8x16xf32, #tpu.memory_space<vmem>>, %arg12: memref<8x16xf32, #tpu.memory_space<vmem>>) attributes {dimension_semantics = [#tpu.dimension_semantics<parallel>], iteration_bounds = array<i64: 1>, scalar_prefetch = 0 : i64, scratch_operands = 0 : i64, tpu.core_type = #tpu.core_type<tc>, window_params = [{transform_indices = @transform_0, window_bounds = array<i64: 16, 3>}, {transform_indices = @transform_1, window_bounds = array<i64: 1, 16>}, {pipeline_mode = #tpu.pipeline_mode<synchronous>, transform_indices = @transform_2, window_bounds = array<i64: 32, 8>}, {pipeline_mode = #tpu.pipeline_mode<synchronous>, transform_indices = @transform_3, window_bounds = array<i64: 3, 32>}, {pipeline_mode = #tpu.pipeline_mode<synchronous>, transform_indices = @transform_4, window_bounds = array<i64: 32, 32>}, {pipeline_mode = #tpu.pipeline_mode<synchronous>, transform_indices = @transform_5, window_bounds = array<i64: 32, 1>}, {pipeline_mode = #tpu.pipeline_mode<synchronous>, transform_indices = @transform_6, window_bounds = array<i64: 32, 32>}, {pipeline_mode = #tpu.pipeline_mode<synchronous>, transform_indices = @transform_7, window_bounds = array<i64: 32, 1>}, {pipeline_mode = #tpu.pipeline_mode<synchronous>, transform_indices = @transform_8, window_bounds = array<i64: 16, 32>}, {pipeline_mode = #tpu.pipeline_mode<synchronous>, transform_indices = @transform_9, window_bounds = array<i64: 16, 1>}, {transform_indices = @transform_10, window_bounds = array<i64: 8, 16>}, {transform_indices = @transform_11, window_bounds = array<i64: 8, 16>}]} {
    %c0 = arith.constant 0 : index
    %c0_0 = arith.constant 0 : index
    %0 = vector.load %arg1[%c0, %c0_0] : memref<16x3xf32, #tpu.memory_space<vmem>>, vector<16x3xf32>
    %c0_1 = arith.constant 0 : index
    %c0_2 = arith.constant 0 : index
    %1 = vector.load %arg4[%c0_1, %c0_2] : memref<3x32xf32, #tpu.memory_space<vmem>>, vector<3x32xf32>
    %cst = arith.constant dense<0.000000e+00> : vector<16x32xf32>
    %2 = tpu.matmul %0, %1, %cst {dimension_numbers = #tpu.dot_dimension_numbers<[1], [0], [0], [1], [0, 0, 1, 1], [], []>} : vector<16x3xf32>, vector<3x32xf32>, vector<16x32xf32> -> vector<16x32xf32>
    %3 = tpu.transpose %2, [1, 0] : vector<16x32xf32> -> vector<32x16xf32>
    %c0_3 = arith.constant 0 : index
    %c0_4 = arith.constant 0 : index
    %4 = vector.load %arg2[%c0_3, %c0_4] : memref<1x16xi32, #tpu.memory_space<vmem>>, vector<1x16xi32>
    %5 = tpu.iota {dimensions = array<i32: 0>} : vector<8x16xi32>
    %6 = vector.broadcast %4 : vector<1x16xi32> to vector<8x16xi32>
    %7 = arith.cmpi eq, %5, %6 : vector<8x16xi32>
    %cst_5 = arith.constant 1.000000e+00 : f32
    %cst_6 = arith.constant 0.000000e+00 : f32
    %8 = vector.broadcast %cst_5 : f32 to vector<8x16xf32>
    %9 = vector.broadcast %cst_6 : f32 to vector<8x16xf32>
    %10 = arith.select %7, %8, %9 : vector<8x16xi1>, vector<8x16xf32>
    %c0_7 = arith.constant 0 : index
    %c0_8 = arith.constant 0 : index
    %11 = vector.load %arg3[%c0_7, %c0_8] : memref<32x8xf32, #tpu.memory_space<vmem>>, vector<32x8xf32>
    %cst_9 = arith.constant dense<0.000000e+00> : vector<32x16xf32>
    %12 = tpu.matmul %11, %10, %cst_9 {dimension_numbers = #tpu.dot_dimension_numbers<[1], [0], [0], [1], [0, 0, 1, 1], [], []>} : vector<32x8xf32>, vector<8x16xf32>, vector<32x16xf32> -> vector<32x16xf32>
    %13 = arith.addf %3, %12 : vector<32x16xf32>
    %cst_10 = arith.constant 0.000000e+00 : f32
    %14 = vector.broadcast %cst_10 : f32 to vector<32x16xf32>
    %15 = arith.maximumf %13, %14 : vector<32x16xf32>
    %c0_11 = arith.constant 0 : index
    %c0_12 = arith.constant 0 : index
    %16 = vector.load %arg5[%c0_11, %c0_12] : memref<32x32xf32, #tpu.memory_space<vmem>>, vector<32x32xf32>
    %cst_13 = arith.constant dense<0.000000e+00> : vector<32x16xf32>
    %17 = tpu.matmul %16, %15, %cst_13 {dimension_numbers = #tpu.dot_dimension_numbers<[1], [0], [0], [1], [0, 0, 1, 1], [], []>} : vector<32x32xf32>, vector<32x16xf32>, vector<32x16xf32> -> vector<32x16xf32>
    %c0_14 = arith.constant 0 : index
    %c0_15 = arith.constant 0 : index
    %18 = vector.load %arg6[%c0_14, %c0_15] : memref<32x1xf32, #tpu.memory_space<vmem>>, vector<32x1xf32>
    %19 = vector.broadcast %18 : vector<32x1xf32> to vector<32x16xf32>
    %20 = arith.addf %17, %19 : vector<32x16xf32>
    %cst_16 = arith.constant 0.000000e+00 : f32
    %21 = vector.broadcast %cst_16 : f32 to vector<32x16xf32>
    %22 = arith.maximumf %20, %21 : vector<32x16xf32>
    %c0_17 = arith.constant 0 : index
    %c0_18 = arith.constant 0 : index
    %23 = vector.load %arg7[%c0_17, %c0_18] : memref<32x32xf32, #tpu.memory_space<vmem>>, vector<32x32xf32>
    %cst_19 = arith.constant dense<0.000000e+00> : vector<32x16xf32>
    %24 = tpu.matmul %23, %22, %cst_19 {dimension_numbers = #tpu.dot_dimension_numbers<[1], [0], [0], [1], [0, 0, 1, 1], [], []>} : vector<32x32xf32>, vector<32x16xf32>, vector<32x16xf32> -> vector<32x16xf32>
    %c0_20 = arith.constant 0 : index
    %c0_21 = arith.constant 0 : index
    %25 = vector.load %arg8[%c0_20, %c0_21] : memref<32x1xf32, #tpu.memory_space<vmem>>, vector<32x1xf32>
    %26 = vector.broadcast %25 : vector<32x1xf32> to vector<32x16xf32>
    %27 = arith.addf %24, %26 : vector<32x16xf32>
    %cst_22 = arith.constant 0.000000e+00 : f32
    %28 = vector.broadcast %cst_22 : f32 to vector<32x16xf32>
    %29 = arith.maximumf %27, %28 : vector<32x16xf32>
    %c0_23 = arith.constant 0 : index
    %c0_24 = arith.constant 0 : index
    %30 = vector.load %arg9[%c0_23, %c0_24] : memref<16x32xf32, #tpu.memory_space<vmem>>, vector<16x32xf32>
    %cst_25 = arith.constant dense<0.000000e+00> : vector<16x16xf32>
    %31 = tpu.matmul %30, %29, %cst_25 {dimension_numbers = #tpu.dot_dimension_numbers<[1], [0], [0], [1], [0, 0, 1, 1], [], []>} : vector<16x32xf32>, vector<32x16xf32>, vector<16x16xf32> -> vector<16x16xf32>
    %c0_26 = arith.constant 0 : index
    %c0_27 = arith.constant 0 : index
    %32 = vector.load %arg10[%c0_26, %c0_27] : memref<16x1xf32, #tpu.memory_space<vmem>>, vector<16x1xf32>
    %33 = vector.broadcast %32 : vector<16x1xf32> to vector<16x16xf32>
    %34 = arith.addf %31, %33 : vector<16x16xf32>
    %35 = vector.extract_strided_slice %34 {offsets = [0, 0], sizes = [8, 16], strides = [1, 1]} : vector<16x16xf32> to vector<8x16xf32>
    %c0_28 = arith.constant 0 : index
    %c0_29 = arith.constant 0 : index
    %36 = vector.load %arg11[%c0_28, %c0_29] : memref<8x16xf32, #tpu.memory_space<vmem>>, vector<8x16xf32>
    tpu.vector_store %arg11[%c0_28, %c0_29], %35 {strides = array<i32>} : memref<8x16xf32, #tpu.memory_space<vmem>>, vector<8x16xf32>,
    %37 = vector.extract_strided_slice %34 {offsets = [8, 0], sizes = [8, 16], strides = [1, 1]} : vector<16x16xf32> to vector<8x16xf32>
    %cst_30 = arith.constant 0.000000e+00 : f32
    %38 = vector.broadcast %cst_30 : f32 to vector<8x16xf32>
    %39 = arith.maximumf %37, %38 : vector<8x16xf32>
    %40 = math.absf %37 : vector<8x16xf32>
    %cst_31 = arith.constant 0.000000e+00 : f32
    %41 = vector.broadcast %cst_31 : f32 to vector<8x16xf32>
    %42 = arith.subf %41, %40 : vector<8x16xf32>
    %43 = math.exp %42 : vector<8x16xf32>
    %44 = math.log1p %43 : vector<8x16xf32>
    %45 = arith.addf %39, %44 : vector<8x16xf32>
    %cst_32 = arith.constant 0.899999976 : f32
    %46 = vector.broadcast %cst_32 : f32 to vector<8x16xf32>
    %47 = arith.mulf %46, %45 : vector<8x16xf32>
    %cst_33 = arith.constant 1.000000e-01 : f32
    %48 = vector.broadcast %cst_33 : f32 to vector<8x16xf32>
    %49 = arith.addf %48, %47 : vector<8x16xf32>
    %c0_34 = arith.constant 0 : index
    %c0_35 = arith.constant 0 : index
    %50 = vector.load %arg12[%c0_34, %c0_35] : memref<8x16xf32, #tpu.memory_space<vmem>>, vector<8x16xf32>
    tpu.vector_store %arg12[%c0_34, %c0_35], %49 {strides = array<i32>} : memref<8x16xf32, #tpu.memory_space<vmem>>, vector<8x16xf32>,
    return
  }
  func.func @transform_0(%arg0: i32) -> (i32, i32) {
    %c0_i32 = arith.constant 0 : i32
    %c0_i32_0 = arith.constant 0 : i32
    return %arg0, %c0_i32 : i32, i32
  }
  func.func @transform_1(%arg0: i32) -> (i32, i32) {
    %c0_i32 = arith.constant 0 : i32
    %c0_i32_0 = arith.constant 0 : i32
    return %c0_i32, %arg0 : i32, i32
  }
  func.func @transform_2(%arg0: i32) -> (i32, i32) {
    %c0_i32 = arith.constant 0 : i32
    %c0_i32_0 = arith.constant 0 : i32
    %c0_i32_1 = arith.constant 0 : i32
    return %c0_i32, %c0_i32_0 : i32, i32
  }
  func.func @transform_3(%arg0: i32) -> (i32, i32) {
    %c0_i32 = arith.constant 0 : i32
    %c0_i32_0 = arith.constant 0 : i32
    %c0_i32_1 = arith.constant 0 : i32
    return %c0_i32, %c0_i32_0 : i32, i32
  }
  func.func @transform_4(%arg0: i32) -> (i32, i32) {
    %c0_i32 = arith.constant 0 : i32
    %c0_i32_0 = arith.constant 0 : i32
    %c0_i32_1 = arith.constant 0 : i32
    return %c0_i32, %c0_i32_0 : i32, i32
  }
  func.func @transform_5(%arg0: i32) -> (i32, i32) {
    %c0_i32 = arith.constant 0 : i32
    %c0_i32_0 = arith.constant 0 : i32
    %c0_i32_1 = arith.constant 0 : i32
    return %c0_i32, %c0_i32_0 : i32, i32
  }
  func.func @transform_6(%arg0: i32) -> (i32, i32) {
    %c0_i32 = arith.constant 0 : i32
    %c0_i32_0 = arith.constant 0 : i32
    %c0_i32_1 = arith.constant 0 : i32
    return %c0_i32, %c0_i32_0 : i32, i32
  }
  func.func @transform_7(%arg0: i32) -> (i32, i32) {
    %c0_i32 = arith.constant 0 : i32
    %c0_i32_0 = arith.constant 0 : i32
    %c0_i32_1 = arith.constant 0 : i32
    return %c0_i32, %c0_i32_0 : i32, i32
  }
  func.func @transform_8(%arg0: i32) -> (i32, i32) {
    %c0_i32 = arith.constant 0 : i32
    %c0_i32_0 = arith.constant 0 : i32
    %c0_i32_1 = arith.constant 0 : i32
    return %c0_i32, %c0_i32_0 : i32, i32
  }
  func.func @transform_9(%arg0: i32) -> (i32, i32) {
    %c0_i32 = arith.constant 0 : i32
    %c0_i32_0 = arith.constant 0 : i32
    %c0_i32_1 = arith.constant 0 : i32
    return %c0_i32, %c0_i32_0 : i32, i32
  }
  func.func @transform_10(%arg0: i32) -> (i32, i32) {
    %c0_i32 = arith.constant 0 : i32
    %c0_i32_0 = arith.constant 0 : i32
    return %c0_i32, %arg0 : i32, i32
  }
  func.func @transform_11(%arg0: i32) -> (i32, i32) {
    %c0_i32 = arith.constant 0 : i32
    %c0_i32_0 = arith.constant 0 : i32
    return %c0_i32, %arg0 : i32, i32
  }
}

</mosaic_0001>

<llo_original>
// kernel: decoder_forward.1
$region0: #{decoder_forward.1}
  #allocation0 [shape = 'u32[]', space=smem, size = 0x4, offset = 0x4, fixed_abs, tag = 'smem constant byte address 0x4 - core index']
  #allocation1 [shape = 'u32[144,128]{1,0:T(1,128)}', space=vmem, size = 0x12000, scoped, tag = 'internal scratch']
  %s0 = inlined_call_operand.vmem [shape: f32[16,3], index: 0, kind: input, shape index: {}]
  %s1 = inlined_call_operand.vmem [shape: s32[1,16], index: 1, kind: input, shape index: {}]
  %s2 = inlined_call_operand.vmem [shape: f32[32,8], index: 2, kind: input, shape index: {}]
  %s3 = inlined_call_operand.vmem [shape: f32[3,32], index: 3, kind: input, shape index: {}]
  %s4 = inlined_call_operand.vmem [shape: f32[32,32], index: 4, kind: input, shape index: {}]
  %s5 = inlined_call_operand.vmem [shape: f32[32,1], index: 5, kind: input, shape index: {}]
  %s6 = inlined_call_operand.vmem [shape: f32[32,32], index: 6, kind: input, shape index: {}]
  %s7 = inlined_call_operand.vmem [shape: f32[32,1], index: 7, kind: input, shape index: {}]
  %s8 = inlined_call_operand.vmem [shape: f32[16,32], index: 8, kind: input, shape index: {}]
  %s9 = inlined_call_operand.vmem [shape: f32[16,1], index: 9, kind: input, shape index: {}]
  %s10 = inlined_call_operand.vmem [shape: f32[8,16], index: 10, kind: output, shape index: {0}]
  %s11 = inlined_call_operand.vmem [shape: f32[8,16], index: 11, kind: output, shape index: {1}]
  %12 = xla_tuple %s10, %s11
  %s13 = sld [smem:[#allocation0]]
  $region58: #{decoder_forward.1} parent=0
    _
  %s15 = ssub.s32 1, %s13
  %s16 = scalar_select 0, %s15, %s13
  // Predicated region
  $region2: #{decoder_forward.1} parent=0 // pred_check
    _
  $region3: #{decoder_forward.1} parent=0 // pred_check_branch
    %18 = sbr.rel (0) target = $region5
  $region4: #{decoder_forward.1} parent=0 // pred_region
    _
  $region5: #{decoder_forward.1} parent=0 // pred_fallthru
    _
  // Predicated region
  $region6: #{decoder_forward.1} parent=0 // pred_check
    _
  $region7: #{decoder_forward.1} parent=0 // pred_check_branch
    %20 = sbr.rel (0) target = $region9
  $region8: #{decoder_forward.1} parent=0 // pred_region
    _
  $region9: #{decoder_forward.1} parent=0 // pred_fallthru
    _
  // Predicated region
  $region10: #{decoder_forward.1} parent=0 // pred_check
    _
  $region11: #{decoder_forward.1} parent=0 // pred_check_branch
    %22 = sbr.rel (0) target = $region13
  $region12: #{decoder_forward.1} parent=0 // pred_region
    _
  $region13: #{decoder_forward.1} parent=0 // pred_fallthru
    _
  // Predicated region
  $region14: #{decoder_forward.1} parent=0 // pred_check
    _
  $region15: #{decoder_forward.1} parent=0 // pred_check_branch
    %24 = sbr.rel (0) target = $region17
  $region16: #{decoder_forward.1} parent=0 // pred_region
    _
  $region17: #{decoder_forward.1} parent=0 // pred_fallthru
    _
  // Predicated region
  $region18: #{decoder_forward.1} parent=0 // pred_check
    _
  $region19: #{decoder_forward.1} parent=0 // pred_check_branch
    %26 = sbr.rel (0) target = $region21
  $region20: #{decoder_forward.1} parent=0 // pred_region
    _
  $region21: #{decoder_forward.1} parent=0 // pred_fallthru
    _
  // Predicated region
  $region22: #{decoder_forward.1} parent=0 // pred_check
    _
  $region23: #{decoder_forward.1} parent=0 // pred_check_branch
    %28 = sbr.rel (0) target = $region25
  $region24: #{decoder_forward.1} parent=0 // pred_region
    _
  $region25: #{decoder_forward.1} parent=0 // pred_fallthru
    _
  // Predicated region
  $region26: #{decoder_forward.1} parent=0 // pred_check
    _
  $region27: #{decoder_forward.1} parent=0 // pred_check_branch
    %30 = sbr.rel (0) target = $region29
  $region28: #{decoder_forward.1} parent=0 // pred_region
    _
  $region29: #{decoder_forward.1} parent=0 // pred_fallthru
    _
  // Predicated region
  $region30: #{decoder_forward.1} parent=0 // pred_check
    _
  $region31: #{decoder_forward.1} parent=0 // pred_check_branch
    %32 = sbr.rel (0) target = $region33
  $region32: #{decoder_forward.1} parent=0 // pred_region
    _
  $region33: #{decoder_forward.1} parent=0 // pred_fallthru
    _
  // Predicated region
  $region34: #{decoder_forward.1} parent=0 // pred_check
    _
  $region35: #{decoder_forward.1} parent=0 // pred_check_branch
    %34 = sbr.rel (0) target = $region37
  $region36: #{decoder_forward.1} parent=0 // pred_region
    _
  $region37: #{decoder_forward.1} parent=0 // pred_fallthru
    _
  // Predicated region
  $region38: #{decoder_forward.1} parent=0 // pred_check
    _
  $region39: #{decoder_forward.1} parent=0 // pred_check_branch
    %36 = sbr.rel (0) target = $region41
  $region40: #{decoder_forward.1} parent=0 // pred_region
    _
  $region41: #{decoder_forward.1} parent=0 // pred_fallthru
    _
  %v37 = vld [vmem:[%s0] sm:$0xff]
  %v38 = vld [vmem:[%s0 + $0x8] sm:$0xff]
  %v39 = vld [vmem:[%s3] sm:$0x7]
  %vm40 = vcmask 23552
  %v42 = vsel %vm40, %v37, 0
  %v45 = vsel %vm40, %v38, 0
  %vm47 = vcmask 1042432
  %v49 = vsel %vm47, %v39, 0
  %51 = vmatprep.subr.mxu0 0.0
  %52 = vmatpush1.msra.mxu0 %v49
  %53 = vmatprep.subr.mxu0 0.0
  %54 = vmatpush1.msra.mxu0 0.0
  %55 = vmatprep.subr.mxu0 0.0
  %56 = vmatpush1.msra.mxu0 0.0
  %57 = vmatprep.subr.mxu0 0.0
  %58 = vmatpush1.msra.mxu0 0.0
  %59 = vmatprep.subr.mxu0 0.0
  %60 = vmatpush1.msra.mxu0 0.0
  %61 = vmatprep.subr.mxu0 0.0
  %62 = vmatpush1.msra.mxu0 0.0
  %63 = vmatprep.subr.mxu0 0.0
  %64 = vmatpush1.msra.mxu0 0.0
  %65 = vmatprep.subr.mxu0 0.0
  %66 = vmatpush1.msra.mxu0 0.0
  %67 = vmatprep.subr.mxu0 0.0
  %68 = vmatpush1.msra.mxu0 0.0
  %69 = vmatprep.subr.mxu0 0.0
  %70 = vmatpush1.msra.mxu0 0.0
  %71 = vmatprep.subr.mxu0 0.0
  %72 = vmatpush1.msra.mxu0 0.0
  %73 = vmatprep.subr.mxu0 0.0
  %74 = vmatpush1.msra.mxu0 0.0
  %75 = vmatprep.subr.mxu0 0.0
  %76 = vmatpush1.msra.mxu0 0.0
  %77 = vmatprep.subr.mxu0 0.0
  %78 = vmatpush1.msra.mxu0 0.0
  %79 = vmatprep.subr.mxu0 0.0
  %80 = vmatpush1.msra.mxu0 0.0
  %81 = vmatprep.subr.mxu0 0.0
  %82 = vmatpush1.msra.mxu0 0.0
  %83 = vmatprep.subr.mxu0 0.0
  %84 = vmatpush1.msra.mxu0 0.0
  %85 = vmatprep.subr.mxu0 0.0
  %86 = vmatpush1.msra.mxu0 0.0
  %87 = vmatprep.subr.mxu0 0.0
  %88 = vmatpush1.msra.mxu0 0.0
  %89 = vmatprep.subr.mxu0 0.0
  %90 = vmatpush1.msra.mxu0 0.0
  %91 = vmatprep.subr.mxu0 0.0
  %92 = vmatpush1.msra.mxu0 0.0
  %93 = vmatprep.subr.mxu0 0.0
  %94 = vmatpush1.msra.mxu0 0.0
  %95 = vmatprep.subr.mxu0 0.0
  %96 = vmatpush1.msra.mxu0 0.0
  %97 = vmatprep.subr.mxu0 0.0
  %98 = vmatpush1.msra.mxu0 0.0
  %99 = vmatprep.subr.mxu0 0.0
  %100 = vmatpush1.msra.mxu0 0.0
  %101 = vmatprep.subr.mxu0 0.0
  %102 = vmatpush1.msra.mxu0 0.0
  %103 = vmatprep.subr.mxu0 0.0
  %104 = vmatpush1.msra.mxu0 0.0
  %105 = vmatprep.subr.mxu0 0.0
  %106 = vmatpush1.msra.mxu0 0.0
  %107 = vmatprep.subr.mxu0 0.0
  %108 = vmatpush1.msra.mxu0 0.0
  %109 = vmatprep.subr.mxu0 0.0
  %110 = vmatpush1.msra.mxu0 0.0
  %111 = vmatprep.subr.mxu0 0.0
  %112 = vmatpush1.msra.mxu0 0.0
  %113 = vmatprep.subr.mxu0 0.0
  %114 = vmatpush1.msra.mxu0 0.0
  %115 = vmatprep.mubr.f32.mxu0 0.0
  %116 = vmatmul.mubr.f32.gmra.mrb[0].mxu0 %v42
  %v117 = vpop.f32.mrb[0].mxu0
  %v118 = vadd.f32 0.0, %v117
  %v119 = vpop.f32.mrb[0].mxu0
  %120 = vmatprep.mubr.f32.mxu0 0.0
  %121 = vmatmul.mubr.f32.gmra.mrb[0].mxu0 %v45
  %v122 = vpop.f32.mrb[0].mxu0
  %v123 = vadd.f32 0.0, %v122
  %v124 = vpop.f32.mrb[0].mxu0
  %125 = vdwg.mxu0
  %126 = vxpose.xlu0.b32.start [1/16] %v118, 128
  %127 = vxpose.xlu0.b32.cont [2/16] %v123, 128
  %128 = vxpose.xlu0.b32.cont [3/16] 0.0, 128
  %129 = vxpose.xlu0.b32.cont [4/16] 0.0, 128
  %130 = vxpose.xlu0.b32.cont [5/16] 0.0, 128
  %131 = vxpose.xlu0.b32.cont [6/16] 0.0, 128
  %132 = vxpose.xlu0.b32.cont [7/16] 0.0, 128
  %133 = vxpose.xlu0.b32.cont [8/16] 0.0, 128
  %134 = vxpose.xlu0.b32.cont [9/16] 0.0, 128
  %135 = vxpose.xlu0.b32.cont [10/16] 0.0, 128
  %136 = vxpose.xlu0.b32.cont [11/16] 0.0, 128
  %137 = vxpose.xlu0.b32.cont [12/16] 0.0, 128
  %138 = vxpose.xlu0.b32.cont [13/16] 0.0, 128
  %139 = vxpose.xlu0.b32.cont [14/16] 0.0, 128
  %140 = vxpose.xlu0.b32.cont [15/16] 0.0, 128
  %141 = vxpose.xlu0.b32.end [16/16] 0.0, 128
  %v142 = vpop.trf.xlu0
  %v143 = vpop.trf.xlu0
  %v144 = vpop.trf.xlu0
  %v145 = vpop.trf.xlu0
  %v146 = vpop.trf.xlu0
  %v147 = vpop.trf.xlu0
  %v148 = vpop.trf.xlu0
  %v149 = vpop.trf.xlu0
  %v150 = vpop.trf.xlu0
  %v151 = vpop.trf.xlu0
  %v152 = vpop.trf.xlu0
  %v153 = vpop.trf.xlu0
  %v154 = vpop.trf.xlu0
  %v155 = vpop.trf.xlu0
  %v156 = vpop.trf.xlu0
  %v157 = vpop.trf.xlu0
  %v158 = vld [vmem:[%s1] sm:$0x1]
  %v159 = vlaneseq
  %v160 = vshrl.u32 %v159, 7
  %v161 = vlaneseq
  %v162 = vshrl.u32 %v161, 7
  %v163 = vsub.s32 0, %v162
  %v164 = vrot.slane %v158, %v163
  %vm165 = vcmp.eq.s32.totalorder %v160, %v164
  %v166 = vsel %vm165, 1.0, 0.0
  %v167 = vld [vmem:[%s2] sm:$0xff]
  %v168 = vld [vmem:[%s2 + $0x8] sm:$0xff]
  %v169 = vld [vmem:[%s2 + $0x10] sm:$0xff]
  %v170 = vld [vmem:[%s2 + $0x18] sm:$0xff]
  %vm171 = vcmask 64512
  %v173 = vsel %vm171, %v167, 0
  %v176 = vsel %vm171, %v168, 0
  %v179 = vsel %vm171, %v169, 0
  %v182 = vsel %vm171, %v170, 0
  %184 = vmatprep.subr.mxu0 0.0
  %185 = vmatpush1.msra.mxu0 %v166
  %186 = vmatprep.subr.mxu0 0.0
  %187 = vmatpush1.msra.mxu0 0.0
  %188 = vmatprep.subr.mxu0 0.0
  %189 = vmatpush1.msra.mxu0 0.0
  %190 = vmatprep.subr.mxu0 0.0
  %191 = vmatpush1.msra.mxu0 0.0
  %192 = vmatprep.subr.mxu0 0.0
  %193 = vmatpush1.msra.mxu0 0.0
  %194 = vmatprep.subr.mxu0 0.0
  %195 = vmatpush1.msra.mxu0 0.0
  %196 = vmatprep.subr.mxu0 0.0
  %197 = vmatpush1.msra.mxu0 0.0
  %198 = vmatprep.subr.mxu0 0.0
  %199 = vmatpush1.msra.mxu0 0.0
  %200 = vmatprep.subr.mxu0 0.0
  %201 = vmatpush1.msra.mxu0 0.0
  %202 = vmatprep.subr.mxu0 0.0
  %203 = vmatpush1.msra.mxu0 0.0
  %204 = vmatprep.subr.mxu0 0.0
  %205 = vmatpush1.msra.mxu0 0.0
  %206 = vmatprep.subr.mxu0 0.0
  %207 = vmatpush1.msra.mxu0 0.0
  %208 = vmatprep.subr.mxu0 0.0
  %209 = vmatpush1.msra.mxu0 0.0
  %210 = vmatprep.subr.mxu0 0.0
  %211 = vmatpush1.msra.mxu0 0.0
  %212 = vmatprep.subr.mxu0 0.0
  %213 = vmatpush1.msra.mxu0 0.0
  %214 = vmatprep.subr.mxu0 0.0
  %215 = vmatpush1.msra.mxu0 0.0
  %216 = vmatprep.subr.mxu0 0.0
  %217 = vmatpush1.msra.mxu0 0.0
  %218 = vmatprep.subr.mxu0 0.0
  %219 = vmatpush1.msra.mxu0 0.0
  %220 = vmatprep.subr.mxu0 0.0
  %221 = vmatpush1.msra.mxu0 0.0
  %222 = vmatprep.subr.mxu0 0.0
  %223 = vmatpush1.msra.mxu0 0.0
  %224 = vmatprep.subr.mxu0 0.0
  %225 = vmatpush1.msra.mxu0 0.0
  %226 = vmatprep.subr.mxu0 0.0
  %227 = vmatpush1.msra.mxu0 0.0
  %228 = vmatprep.subr.mxu0 0.0
  %229 = vmatpush1.msra.mxu0 0.0
  %230 = vmatprep.subr.mxu0 0.0
  %231 = vmatpush1.msra.mxu0 0.0
  %232 = vmatprep.subr.mxu0 0.0
  %233 = vmatpush1.msra.mxu0 0.0
  %234 = vmatprep.subr.mxu0 0.0
  %235 = vmatpush1.msra.mxu0 0.0
  %236 = vmatprep.subr.mxu0 0.0
  %237 = vmatpush1.msra.mxu0 0.0
  %238 = vmatprep.subr.mxu0 0.0
  %239 = vmatpush1.msra.mxu0 0.0
  %240 = vmatprep.subr.mxu0 0.0
  %241 = vmatpush1.msra.mxu0 0.0
  %242 = vmatprep.subr.mxu0 0.0
  %243 = vmatpush1.msra.mxu0 0.0
  %244 = vmatprep.subr.mxu0 0.0
  %245 = vmatpush1.msra.mxu0 0.0
  %246 = vmatprep.subr.mxu0 0.0
  %247 = vmatpush1.msra.mxu0 0.0
  %248 = vmatprep.mubr.f32.mxu0 0.0
  %249 = vmatmul.mubr.f32.gmra.mrb[0].mxu0 %v173
  %v250 = vpop.f32.mrb[0].mxu0
  %v251 = vadd.f32 0.0, %v250
  %v252 = vpop.f32.mrb[0].mxu0
  %253 = vmatprep.mubr.f32.mxu0 0.0
  %254 = vmatmul.mubr.f32.gmra.mrb[0].mxu0 %v176
  %v255 = vpop.f32.mrb[0].mxu0
  %v256 = vadd.f32 0.0, %v255
  %v257 = vpop.f32.mrb[0].mxu0
  %258 = vmatprep.mubr.f32.mxu0 0.0
  %259 = vmatmul.mubr.f32.gmra.mrb[0].mxu0 %v179
  %v260 = vpop.f32.mrb[0].mxu0
  %v261 = vadd.f32 0.0, %v260
  %v262 = vpop.f32.mrb[0].mxu0
  %263 = vmatprep.mubr.f32.mxu0 0.0
  %264 = vmatmul.mubr.f32.gmra.mrb[0].mxu0 %v182
  %v265 = vpop.f32.mrb[0].mxu0
  %v266 = vadd.f32 0.0, %v265
  %v267 = vpop.f32.mrb[0].mxu0
  %268 = vdwg.mxu0
  %v269 = vadd.f32 %v142, %v251
  %v270 = vadd.f32 %v143, %v256
  %v271 = vadd.f32 %v144, %v261
  %v272 = vadd.f32 %v145, %v266
  %v273 = vmax.f32 %v269, 0.0
  %v274 = vmax.f32 %v270, 0.0
  %v275 = vmax.f32 %v271, 0.0
  %v276 = vmax.f32 %v272, 0.0
  %v277 = vld [vmem:[%s4] sm:$0xff]
  %v278 = vld [vmem:[%s4 + $0x8] sm:$0xff]
  %v279 = vld [vmem:[%s4 + $0x10] sm:$0xff]
  %v280 = vld [vmem:[%s4 + $0x18] sm:$0xff]
  %v281 = vld [vmem:[%s5] sm:$0xff]
  %v282 = vld [vmem:[%s5 + $0x8] sm:$0xff]
  %v283 = vld [vmem:[%s5 + $0x10] sm:$0xff]
  %v284 = vld [vmem:[%s5 + $0x18] sm:$0xff]
  %286 = vset.pattern.permute.xlu0 0
  %287 = vperm.xlu0 %286, %v281
  %v288 = vpop.permute.xlu0 %287
  %291 = vset.pattern.permute.xlu0 0
  %292 = vperm.xlu0 %291, %v282
  %v293 = vpop.permute.xlu0 %292
  %296 = vset.pattern.permute.xlu0 0
  %297 = vperm.xlu0 %296, %v283
  %v298 = vpop.permute.xlu0 %297
  %301 = vset.pattern.permute.xlu0 0
  %302 = vperm.xlu0 %301, %v284
  %v303 = vpop.permute.xlu0 %302
  %vm305 = vcmask 261120
  %v307 = vsel %vm305, %v277, 0
  %v310 = vsel %vm305, %v278, 0
  %v313 = vsel %vm305, %v279, 0
  %v316 = vsel %vm305, %v280, 0
  %318 = vmatprep.subr.mxu0 0.0
  %319 = vmatpush1.msra.mxu0 %v273
  %320 = vmatprep.subr.mxu0 0.0
  %321 = vmatpush1.msra.mxu0 %v274
  %322 = vmatprep.subr.mxu0 0.0
  %323 = vmatpush1.msra.mxu0 %v275
  %324 = vmatprep.subr.mxu0 0.0
  %325 = vmatpush1.msra.mxu0 %v276
  %326 = vmatprep.subr.mxu0 0.0
  %327 = vmatpush1.msra.mxu0 0.0
  %328 = vmatprep.subr.mxu0 0.0
  %329 = vmatpush1.msra.mxu0 0.0
  %330 = vmatprep.subr.mxu0 0.0
  %331 = vmatpush1.msra.mxu0 0.0
  %332 = vmatprep.subr.mxu0 0.0
  %333 = vmatpush1.msra.mxu0 0.0
  %334 = vmatprep.subr.mxu0 0.0
  %335 = vmatpush1.msra.mxu0 0.0
  %336 = vmatprep.subr.mxu0 0.0
  %337 = vmatpush1.msra.mxu0 0.0
  %338 = vmatprep.subr.mxu0 0.0
  %339 = vmatpush1.msra.mxu0 0.0
  %340 = vmatprep.subr.mxu0 0.0
  %341 = vmatpush1.msra.mxu0 0.0
  %342 = vmatprep.subr.mxu0 0.0
  %343 = vmatpush1.msra.mxu0 0.0
  %344 = vmatprep.subr.mxu0 0.0
  %345 = vmatpush1.msra.mxu0 0.0
  %346 = vmatprep.subr.mxu0 0.0
  %347 = vmatpush1.msra.mxu0 0.0
  %348 = vmatprep.subr.mxu0 0.0
  %349 = vmatpush1.msra.mxu0 0.0
  %350 = vmatprep.subr.mxu0 0.0
  %351 = vmatpush1.msra.mxu0 0.0
  %352 = vmatprep.subr.mxu0 0.0
  %353 = vmatpush1.msra.mxu0 0.0
  %354 = vmatprep.subr.mxu0 0.0
  %355 = vmatpush1.msra.mxu0 0.0
  %356 = vmatprep.subr.mxu0 0.0
  %357 = vmatpush1.msra.mxu0 0.0
  %358 = vmatprep.subr.mxu0 0.0
  %359 = vmatpush1.msra.mxu0 0.0
  %360 = vmatprep.subr.mxu0 0.0
  %361 = vmatpush1.msra.mxu0 0.0
  %362 = vmatprep.subr.mxu0 0.0
  %363 = vmatpush1.msra.mxu0 0.0
  %364 = vmatprep.subr.mxu0 0.0
  %365 = vmatpush1.msra.mxu0 0.0
  %366 = vmatprep.subr.mxu0 0.0
  %367 = vmatpush1.msra.mxu0 0.0
  %368 = vmatprep.subr.mxu0 0.0
  %369 = vmatpush1.msra.mxu0 0.0
  %370 = vmatprep.subr.mxu0 0.0
  %371 = vmatpush1.msra.mxu0 0.0
  %372 = vmatprep.subr.mxu0 0.0
  %373 = vmatpush1.msra.mxu0 0.0
  %374 = vmatprep.subr.mxu0 0.0
  %375 = vmatpush1.msra.mxu0 0.0
  %376 = vmatprep.subr.mxu0 0.0
  %377 = vmatpush1.msra.mxu0 0.0
  %378 = vmatprep.subr.mxu0 0.0
  %379 = vmatpush1.msra.mxu0 0.0
  %380 = vmatprep.subr.mxu0 0.0
  %381 = vmatpush1.msra.mxu0 0.0
  %382 = vmatprep.mubr.f32.mxu0 0.0
  %383 = vmatmul.mubr.f32.gmra.mrb[0].mxu0 %v307
  %v384 = vpop.f32.mrb[0].mxu0
  %v385 = vadd.f32 %v288, %v384
  %v386 = vpop.f32.mrb[0].mxu0
  %387 = vmatprep.mubr.f32.mxu0 0.0
  %388 = vmatmul.mubr.f32.gmra.mrb[0].mxu0 %v310
  %v389 = vpop.f32.mrb[0].mxu0
  %v390 = vadd.f32 %v293, %v389
  %v391 = vpop.f32.mrb[0].mxu0
  %392 = vmatprep.mubr.f32.mxu0 0.0
  %393 = vmatmul.mubr.f32.gmra.mrb[0].mxu0 %v313
  %v394 = vpop.f32.mrb[0].mxu0
  %v395 = vadd.f32 %v298, %v394
  %v396 = vpop.f32.mrb[0].mxu0
  %397 = vmatprep.mubr.f32.mxu0 0.0
  %398 = vmatmul.mubr.f32.gmra.mrb[0].mxu0 %v316
  %v399 = vpop.f32.mrb[0].mxu0
  %v400 = vadd.f32 %v303, %v399
  %v401 = vpop.f32.mrb[0].mxu0
  %402 = vdwg.mxu0
  %v403 = vmax.f32 %v385, 0.0
  %v404 = vmax.f32 %v390, 0.0
  %v405 = vmax.f32 %v395, 0.0
  %v406 = vmax.f32 %v400, 0.0
  %v407 = vld [vmem:[%s6] sm:$0xff]
  %v408 = vld [vmem:[%s6 + $0x8] sm:$0xff]
  %v409 = vld [vmem:[%s6 + $0x10] sm:$0xff]
  %v410 = vld [vmem:[%s6 + $0x18] sm:$0xff]
  %v411 = vld [vmem:[%s7] sm:$0xff]
  %v412 = vld [vmem:[%s7 + $0x8] sm:$0xff]
  %v413 = vld [vmem:[%s7 + $0x10] sm:$0xff]
  %v414 = vld [vmem:[%s7 + $0x18] sm:$0xff]
  %416 = vset.pattern.permute.xlu0 0
  %417 = vperm.xlu0 %416, %v411
  %v418 = vpop.permute.xlu0 %417
  %421 = vset.pattern.permute.xlu0 0
  %422 = vperm.xlu0 %421, %v412
  %v423 = vpop.permute.xlu0 %422
  %426 = vset.pattern.permute.xlu0 0
  %427 = vperm.xlu0 %426, %v413
  %v428 = vpop.permute.xlu0 %427
  %431 = vset.pattern.permute.xlu0 0
  %432 = vperm.xlu0 %431, %v414
  %v433 = vpop.permute.xlu0 %432
  %v436 = vsel %vm305, %v407, 0
  %v439 = vsel %vm305, %v408, 0
  %v442 = vsel %vm305, %v409, 0
  %v445 = vsel %vm305, %v410, 0
  %447 = vmatprep.subr.mxu0 0.0
  %448 = vmatpush1.msra.mxu0 %v403
  %449 = vmatprep.subr.mxu0 0.0
  %450 = vmatpush1.msra.mxu0 %v404
  %451 = vmatprep.subr.mxu0 0.0
  %452 = vmatpush1.msra.mxu0 %v405
  %453 = vmatprep.subr.mxu0 0.0
  %454 = vmatpush1.msra.mxu0 %v406
  %455 = vmatprep.subr.mxu0 0.0
  %456 = vmatpush1.msra.mxu0 0.0
  %457 = vmatprep.subr.mxu0 0.0
  %458 = vmatpush1.msra.mxu0 0.0
  %459 = vmatprep.subr.mxu0 0.0
  %460 = vmatpush1.msra.mxu0 0.0
  %461 = vmatprep.subr.mxu0 0.0
  %462 = vmatpush1.msra.mxu0 0.0
  %463 = vmatprep.subr.mxu0 0.0
  %464 = vmatpush1.msra.mxu0 0.0
  %465 = vmatprep.subr.mxu0 0.0
  %466 = vmatpush1.msra.mxu0 0.0
  %467 = vmatprep.subr.mxu0 0.0
  %468 = vmatpush1.msra.mxu0 0.0
  %469 = vmatprep.subr.mxu0 0.0
  %470 = vmatpush1.msra.mxu0 0.0
  %471 = vmatprep.subr.mxu0 0.0
  %472 = vmatpush1.msra.mxu0 0.0
  %473 = vmatprep.subr.mxu0 0.0
  %474 = vmatpush1.msra.mxu0 0.0
  %475 = vmatprep.subr.mxu0 0.0
  %476 = vmatpush1.msra.mxu0 0.0
  %477 = vmatprep.subr.mxu0 0.0
  %478 = vmatpush1.msra.mxu0 0.0
  %479 = vmatprep.subr.mxu0 0.0
  %480 = vmatpush1.msra.mxu0 0.0
  %481 = vmatprep.subr.mxu0 0.0
  %482 = vmatpush1.msra.mxu0 0.0
  %483 = vmatprep.subr.mxu0 0.0
  %484 = vmatpush1.msra.mxu0 0.0
  %485 = vmatprep.subr.mxu0 0.0
  %486 = vmatpush1.msra.mxu0 0.0
  %487 = vmatprep.subr.mxu0 0.0
  %488 = vmatpush1.msra.mxu0 0.0
  %489 = vmatprep.subr.mxu0 0.0
  %490 = vmatpush1.msra.mxu0 0.0
  %491 = vmatprep.subr.mxu0 0.0
  %492 = vmatpush1.msra.mxu0 0.0
  %493 = vmatprep.subr.mxu0 0.0
  %494 = vmatpush1.msra.mxu0 0.0
  %495 = vmatprep.subr.mxu0 0.0
  %496 = vmatpush1.msra.mxu0 0.0
  %497 = vmatprep.subr.mxu0 0.0
  %498 = vmatpush1.msra.mxu0 0.0
  %499 = vmatprep.subr.mxu0 0.0
  %500 = vmatpush1.msra.mxu0 0.0
  %501 = vmatprep.subr.mxu0 0.0
  %502 = vmatpush1.msra.mxu0 0.0
  %503 = vmatprep.subr.mxu0 0.0
  %504 = vmatpush1.msra.mxu0 0.0
  %505 = vmatprep.subr.mxu0 0.0
  %506 = vmatpush1.msra.mxu0 0.0
  %507 = vmatprep.subr.mxu0 0.0
  %508 = vmatpush1.msra.mxu0 0.0
  %509 = vmatprep.subr.mxu0 0.0
  %510 = vmatpush1.msra.mxu0 0.0
  %511 = vmatprep.mubr.f32.mxu0 0.0
  %512 = vmatmul.mubr.f32.gmra.mrb[0].mxu0 %v436
  %v513 = vpop.f32.mrb[0].mxu0
  %v514 = vadd.f32 %v418, %v513
  %v515 = vpop.f32.mrb[0].mxu0
  %516 = vmatprep.mubr.f32.mxu0 0.0
  %517 = vmatmul.mubr.f32.gmra.mrb[0].mxu0 %v439
  %v518 = vpop.f32.mrb[0].mxu0
  %v519 = vadd.f32 %v423, %v518
  %v520 = vpop.f32.mrb[0].mxu0
  %521 = vmatprep.mubr.f32.mxu0 0.0
  %522 = vmatmul.mubr.f32.gmra.mrb[0].mxu0 %v442
  %v523 = vpop.f32.mrb[0].mxu0
  %v524 = vadd.f32 %v428, %v523
  %v525 = vpop.f32.mrb[0].mxu0
  %526 = vmatprep.mubr.f32.mxu0 0.0
  %527 = vmatmul.mubr.f32.gmra.mrb[0].mxu0 %v445
  %v528 = vpop.f32.mrb[0].mxu0
  %v529 = vadd.f32 %v433, %v528
  %v530 = vpop.f32.mrb[0].mxu0
  %531 = vdwg.mxu0
  %v532 = vmax.f32 %v514, 0.0
  %v533 = vmax.f32 %v519, 0.0
  %v534 = vmax.f32 %v524, 0.0
  %v535 = vmax.f32 %v529, 0.0
  %v536 = vld [vmem:[%s8] sm:$0xff]
  %v537 = vld [vmem:[%s8 + $0x8] sm:$0xff]
  %v538 = vld [vmem:[%s9] sm:$0xff]
  %v539 = vld [vmem:[%s9 + $0x8] sm:$0xff]
  %541 = vset.pattern.permute.xlu0 0
  %542 = vperm.xlu0 %541, %v538
  %v543 = vpop.permute.xlu0 %542
  %546 = vset.pattern.permute.xlu0 0
  %547 = vperm.xlu0 %546, %v539
  %v548 = vpop.permute.xlu0 %547
  %v551 = vsel %vm305, %v536, 0
  %v554 = vsel %vm305, %v537, 0
  %556 = vmatprep.subr.mxu0 0.0
  %557 = vmatpush1.msra.mxu0 %v532
  %558 = vmatprep.subr.mxu0 0.0
  %559 = vmatpush1.msra.mxu0 %v533
  %560 = vmatprep.subr.mxu0 0.0
  %561 = vmatpush1.msra.mxu0 %v534
  %562 = vmatprep.subr.mxu0 0.0
  %563 = vmatpush1.msra.mxu0 %v535
  %564 = vmatprep.subr.mxu0 0.0
  %565 = vmatpush1.msra.mxu0 0.0
  %566 = vmatprep.subr.mxu0 0.0
  %567 = vmatpush1.msra.mxu0 0.0
  %568 = vmatprep.subr.mxu0 0.0
  %569 = vmatpush1.msra.mxu0 0.0
  %570 = vmatprep.subr.mxu0 0.0
  %571 = vmatpush1.msra.mxu0 0.0
  %572 = vmatprep.subr.mxu0 0.0
  %573 = vmatpush1.msra.mxu0 0.0
  %574 = vmatprep.subr.mxu0 0.0
  %575 = vmatpush1.msra.mxu0 0.0
  %576 = vmatprep.subr.mxu0 0.0
  %577 = vmatpush1.msra.mxu0 0.0
  %578 = vmatprep.subr.mxu0 0.0
  %579 = vmatpush1.msra.mxu0 0.0
  %580 = vmatprep.subr.mxu0 0.0
  %581 = vmatpush1.msra.mxu0 0.0
  %582 = vmatprep.subr.mxu0 0.0
  %583 = vmatpush1.msra.mxu0 0.0
  %584 = vmatprep.subr.mxu0 0.0
  %585 = vmatpush1.msra.mxu0 0.0
  %586 = vmatprep.subr.mxu0 0.0
  %587 = vmatpush1.msra.mxu0 0.0
  %588 = vmatprep.subr.mxu0 0.0
  %589 = vmatpush1.msra.mxu0 0.0
  %590 = vmatprep.subr.mxu0 0.0
  %591 = vmatpush1.msra.mxu0 0.0
  %592 = vmatprep.subr.mxu0 0.0
  %593 = vmatpush1.msra.mxu0 0.0
  %594 = vmatprep.subr.mxu0 0.0
  %595 = vmatpush1.msra.mxu0 0.0
  %596 = vmatprep.subr.mxu0 0.0
  %597 = vmatpush1.msra.mxu0 0.0
  %598 = vmatprep.subr.mxu0 0.0
  %599 = vmatpush1.msra.mxu0 0.0
  %600 = vmatprep.subr.mxu0 0.0
  %601 = vmatpush1.msra.mxu0 0.0
  %602 = vmatprep.subr.mxu0 0.0
  %603 = vmatpush1.msra.mxu0 0.0
  %604 = vmatprep.subr.mxu0 0.0
  %605 = vmatpush1.msra.mxu0 0.0
  %606 = vmatprep.subr.mxu0 0.0
  %607 = vmatpush1.msra.mxu0 0.0
  %608 = vmatprep.subr.mxu0 0.0
  %609 = vmatpush1.msra.mxu0 0.0
  %610 = vmatprep.subr.mxu0 0.0
  %611 = vmatpush1.msra.mxu0 0.0
  %612 = vmatprep.subr.mxu0 0.0
  %613 = vmatpush1.msra.mxu0 0.0
  %614 = vmatprep.subr.mxu0 0.0
  %615 = vmatpush1.msra.mxu0 0.0
  %616 = vmatprep.subr.mxu0 0.0
  %617 = vmatpush1.msra.mxu0 0.0
  %618 = vmatprep.subr.mxu0 0.0
  %619 = vmatpush1.msra.mxu0 0.0
  %620 = vmatprep.mubr.f32.mxu0 0.0
  %621 = vmatmul.mubr.f32.gmra.mrb[0].mxu0 %v551
  %v622 = vpop.f32.mrb[0].mxu0
  %v623 = vadd.f32 %v543, %v622
  %v624 = vpop.f32.mrb[0].mxu0
  %625 = vmatprep.mubr.f32.mxu0 0.0
  %626 = vmatmul.mubr.f32.gmra.mrb[0].mxu0 %v554
  %v627 = vpop.f32.mrb[0].mxu0
  %v628 = vadd.f32 %v548, %v627
  %v629 = vpop.f32.mrb[0].mxu0
  %630 = vdwg.mxu0
  %vm631 = vcmask 130048
  %632 = vst.msk [vmem:[%s10] sm:$0xff] %vm631, %v623
  %v633 = vmax.f32 %v628, 0.0
  %v634 = vand.u32 2147483647, %v628
  %v635 = vsub.f32 0.0, %v634
  %v636 = vmul.f32 %v635, 1.442695
  %v637 = vpow.pop %v636
  %v638 = vadd.f32 %v637, 1.0
  %v639 = vlog2.pop %v638
  %v640 = vmul.f32 %v639, 0.6931472
  %v641 = vmul.f32 -0.5, %v637
  %v642 = vadd.f32 %v641, 1.0
  %v643 = vmul.f32 %v642, %v637
  %v644 = vand.u32 2147483647, %v637
  %vm645 = vcmp.lt.f32.partialorder %v644, 0.0004427343
  %v646 = vsel %vm645, %v643, %v640
  %v647 = vadd.f32 %v633, %v646
  %v648 = vmul.f32 %v647, 0.9
  %v649 = vadd.f32 %v648, 0.1
  %650 = vst.msk [vmem:[%s11] sm:$0xff] %vm631, %v649
  // Predicated region
  $region42: #{decoder_forward.1} parent=0 // pred_check
    _
  $region43: #{decoder_forward.1} parent=0 // pred_check_branch
    %652 = sbr.rel (0) target = $region45
  $region44: #{decoder_forward.1} parent=0 // pred_region
    _
  $region45: #{decoder_forward.1} parent=0 // pred_fallthru
    _
  // Predicated region
  $region46: #{decoder_forward.1} parent=0 // pred_check
    _
  $region47: #{decoder_forward.1} parent=0 // pred_check_branch
    %654 = sbr.rel (0) target = $region49
  $region48: #{decoder_forward.1} parent=0 // pred_region
    _
  $region49: #{decoder_forward.1} parent=0 // pred_fallthru
    _
  // Predicated region
  $region50: #{decoder_forward.1} parent=0 // pred_check
    _
  $region51: #{decoder_forward.1} parent=0 // pred_check_branch
    %656 = sbr.rel (0) target = $region53
  $region52: #{decoder_forward.1} parent=0 // pred_region
    _
  $region53: #{decoder_forward.1} parent=0 // pred_fallthru
    _
  // Predicated region
  $region54: #{decoder_forward.1} parent=0 // pred_check
    _
  $region55: #{decoder_forward.1} parent=0 // pred_check_branch
    %658 = sbr.rel (0) target = $region57
  $region56: #{decoder_forward.1} parent=0 // pred_region
    _
  $region57: #{decoder_forward.1} parent=0 // pred_fallthru
    _

</llo_original>
